<compile_context>
chip_gen: v7x
topology: tpu7x:2x2x1
jax: 0.10.0
libtpu: 0.0.40
codegen_flags: <defaults>
</compile_context>

<pallas_src>
import functools
import math

import jax
import jax.numpy as jnp
from jax import lax
from jax.experimental import pallas as pl
from jax.experimental.pallas import tpu as pltpu


def mha_kernel(q_ref, k_ref, v_ref, wq_ref, wk_ref, wv_ref, wo_ref,
               out_ref, attn_ref, acc_ref, *, scale):
    h = pl.program_id(2)
    in_dtype = q_ref.dtype

    @pl.when(h == 0)
    def _():
        acc_ref[...] = jnp.zeros_like(acc_ref)

    Q = q_ref[0]                            # (TQ, d_model)
    K = k_ref[0]                            # (L,  d_model)
    V = v_ref[0]                            # (L,  d_model)

    # Per-head projections: full-width (d_model) MXU contractions.
    qh = jnp.dot(Q, wq_ref[0], preferred_element_type=jnp.float32)   # (TQ, d_k)
    kh = jnp.dot(K, wk_ref[0], preferred_element_type=jnp.float32)   # (L,  d_k)
    vh = jnp.dot(V, wv_ref[0], preferred_element_type=jnp.float32)   # (L,  d_v)

    # Fold 1/sqrt(d_k) into Q (TQ*d_k elements, not TQ*L score elements); feed
    # MXU operands in the input dtype (avoids the f32 multi-pass path for bf16).
    qh = (qh * scale).astype(in_dtype)
    kh = kh.astype(in_dtype)
    vh = vh.astype(in_dtype)

    # Q @ K^T with the transpose inside the contraction (no XLU vxpose / copy).
    scores = lax.dot_general(qh, kh, (((1,), (1,)), ((), ())),
                             preferred_element_type=jnp.float32)      # (TQ, L)

    # Numerically-stable softmax; exact per-row reciprocal (attn is returned).
    m = jnp.max(scores, axis=-1, keepdims=True)
    e = jnp.exp(scores - m)
    s = jnp.sum(e, axis=-1, keepdims=True)
    inv = 1.0 / s                                                     # (TQ, 1)
    attn = e * inv                                                    # (TQ, L)
    attn_ref[0, 0] = attn.astype(attn_ref.dtype)

    ctx = jnp.dot(attn.astype(in_dtype), vh,
                  preferred_element_type=jnp.float32)                 # (TQ, d_v)

    # Accumulate this head's output-projection contribution: ctx_h @ Wo[h].
    acc_ref[...] += jnp.dot(ctx.astype(in_dtype), wo_ref[0],
                            preferred_element_type=jnp.float32)       # (TQ, d_model)

    @pl.when(h == pl.num_programs(2) - 1)
    def _():
        out_ref[0] = acc_ref[...].astype(out_ref.dtype)


def _pick_q_tile(L):
    if L <= 512:
        return L
    for tq in (512, 256, 128):
        if L % tq == 0:
            return tq
    return L


def multi_head_attention(Q, K, V, Wq, Wk, Wv, Wo, *, n_heads, d_k, d_v):
    bs, L, d_model = Q.shape
    TQ = _pick_q_tile(L)
    n_q = L // TQ
    attn_dtype = Q.dtype
    itemsize = jnp.dtype(Q.dtype).itemsize

    # Per-head weight slabs: (H, d_model, d_k) / (H, d_v, d_model) so every
    # weight block is full-dim in its last two axes (lane-dense DMA, valid for
    # any d_k/d_v).  One-time layout plumbing outside the kernel.
    Wq_h = Wq.reshape(d_model, n_heads, d_k).transpose(1, 0, 2)
    Wk_h = Wk.reshape(d_model, n_heads, d_k).transpose(1, 0, 2)
    Wv_h = Wv.reshape(d_model, n_heads, d_v).transpose(1, 0, 2)
    Wo_h = Wo.reshape(n_heads, d_v, d_model)

    kernel = functools.partial(mha_kernel, scale=1.0 / math.sqrt(d_k))

    flops = bs * n_q * n_heads * (
        2 * TQ * d_model * d_k            # Q projection (per head / q-tile)
        + 2 * L * d_model * (d_k + d_v)   # K / V projections
        + 2 * TQ * L * (d_k + d_v)        # Q@K^T and P@V
        + 2 * TQ * d_v * d_model)         # W_O contribution
    transcendentals = bs * n_heads * L * L
    w_bytes = (2 * d_model * n_heads * d_k + 2 * d_model * n_heads * d_v) * itemsize
    bytes_accessed = (
        3 * bs * L * d_model * itemsize                               # Q, K, V
        + bs * n_q * w_bytes                                          # weight refetch
        + bs * L * d_model * itemsize                                 # output
        + bs * n_heads * L * L * jnp.dtype(attn_dtype).itemsize)      # attn

    out_shape = (
        jax.ShapeDtypeStruct((bs, L, d_model), Q.dtype),
        jax.ShapeDtypeStruct((bs, n_heads, L, L), attn_dtype),
    )
    grid = (bs, n_q, n_heads)
    in_specs = [
        pl.BlockSpec((1, TQ, d_model), lambda b, qi, h: (b, qi, 0)),   # Q
        pl.BlockSpec((1, L, d_model), lambda b, qi, h: (b, 0, 0)),     # K
        pl.BlockSpec((1, L, d_model), lambda b, qi, h: (b, 0, 0)),     # V
        pl.BlockSpec((1, d_model, d_k), lambda b, qi, h: (h, 0, 0)),   # W_Q[h]
        pl.BlockSpec((1, d_model, d_k), lambda b, qi, h: (h, 0, 0)),   # W_K[h]
        pl.BlockSpec((1, d_model, d_v), lambda b, qi, h: (h, 0, 0)),   # W_V[h]
        pl.BlockSpec((1, d_v, d_model), lambda b, qi, h: (h, 0, 0)),   # W_O[h]
    ]
    out_specs = (
        pl.BlockSpec((1, TQ, d_model), lambda b, qi, h: (b, qi, 0)),
        pl.BlockSpec((1, 1, TQ, L), lambda b, qi, h: (b, h, qi, 0)),
    )
    return pl.pallas_call(
        kernel,
        out_shape=out_shape,
        grid=grid,
        in_specs=in_specs,
        out_specs=out_specs,
        scratch_shapes=[pltpu.VMEM((TQ, d_model), jnp.float32)],
        compiler_params=pltpu.CompilerParams(
            dimension_semantics=("parallel", "parallel", "arbitrary"),
            vmem_limit_bytes=48 * 1024 * 1024),
        cost_estimate=pl.CostEstimate(
            flops=flops,
            transcendentals=transcendentals,
            bytes_accessed=bytes_accessed),
    )(Q, K, V, Wq_h, Wk_h, Wv_h, Wo_h)


def reference_mha(Q, K, V, Wq, Wk, Wv, Wo, *, n_heads, d_k, d_v):
    """Pure-JAX reference mirroring the PyTorch forward exactly."""
    bs, L, d_model = Q.shape
    q_s = (Q @ Wq).reshape(bs, L, n_heads, d_k).transpose(0, 2, 1, 3)
    k_s = (K @ Wk).reshape(bs, L, n_heads, d_k).transpose(0, 2, 3, 1)
    v_s = (V @ Wv).reshape(bs, L, n_heads, d_v).transpose(0, 2, 1, 3)
    scores = jnp.einsum('bhqd,bhdk->bhqk', q_s, k_s) / (d_k ** 0.5)
    attn = jax.nn.softmax(scores, axis=-1)
    ctx = jnp.einsum('bhqk,bhkd->bhqd', attn, v_s)
    ctx = ctx.transpose(0, 2, 1, 3).reshape(bs, L, n_heads * d_v)
    out = ctx @ Wo
    return out, attn


if __name__ == "__main__":
    bs, q_len, d_model = 2, 8, 32
    n_heads, d_k, d_v = 4, 8, 8

    key = jax.random.PRNGKey(0)
    kq, kk, kv, k1, k2, k3, k4 = jax.random.split(key, 7)

    Q = jax.random.normal(kq, (bs, q_len, d_model), jnp.float32)
    K = jax.random.normal(kk, (bs, q_len, d_model), jnp.float32)
    V = jax.random.normal(kv, (bs, q_len, d_model), jnp.float32)

    # Deterministic "Linear" weights (stored as in_features x out_features).
    Wq = jax.random.normal(k1, (d_model, n_heads * d_k), jnp.float32) * 0.1
    Wk = jax.random.normal(k2, (d_model, n_heads * d_k), jnp.float32) * 0.1
    Wv = jax.random.normal(k3, (d_model, n_heads * d_v), jnp.float32) * 0.1
    Wo = jax.random.normal(k4, (n_heads * d_v, d_model), jnp.float32) * 0.1

    out, attn = multi_head_attention(
        Q, K, V, Wq, Wk, Wv, Wo, n_heads=n_heads, d_k=d_k, d_v=d_v)
    jax.block_until_ready((out, attn))

    out_ref, attn_ref = reference_mha(
        Q, K, V, Wq, Wk, Wv, Wo, n_heads=n_heads, d_k=d_k, d_v=d_v)
    assert jnp.allclose(out, out_ref, atol=1e-4, rtol=1e-4)
    assert jnp.allclose(attn, attn_ref, atol=1e-4, rtol=1e-4)

    print("KERNEL_OK")
</pallas_src>

<mosaic_0001>
module attributes {stable_mosaic.version = 11 : i64} {
  func.func @mha_kernel(%arg0: i32, %arg1: i32, %arg2: i32, %arg3: memref<1x8x32xf32, #tpu.memory_space<vmem>>, %arg4: memref<1x8x32xf32, #tpu.memory_space<vmem>>, %arg5: memref<1x8x32xf32, #tpu.memory_space<vmem>>, %arg6: memref<1x32x8xf32, #tpu.memory_space<vmem>>, %arg7: memref<1x32x8xf32, #tpu.memory_space<vmem>>, %arg8: memref<1x32x8xf32, #tpu.memory_space<vmem>>, %arg9: memref<1x8x32xf32, #tpu.memory_space<vmem>>, %arg10: memref<1x8x32xf32, #tpu.memory_space<vmem>>, %arg11: memref<1x1x8x8xf32, #tpu.memory_space<vmem>>, %arg12: memref<8x32xf32, #tpu.memory_space<vmem>>) attributes {dimension_semantics = [#tpu.dimension_semantics<parallel>, #tpu.dimension_semantics<parallel>, #tpu.dimension_semantics<arbitrary>], iteration_bounds = array<i64: 2, 1, 4>, scalar_prefetch = 0 : i64, scratch_operands = 1 : i64, tpu.core_type = #tpu.core_type<tc>, window_params = [{transform_indices = @transform_0, window_bounds = array<i64: 1, 8, 32>}, {transform_indices = @transform_1, window_bounds = array<i64: 1, 8, 32>}, {transform_indices = @transform_2, window_bounds = array<i64: 1, 8, 32>}, {transform_indices = @transform_3, window_bounds = array<i64: 1, 32, 8>}, {transform_indices = @transform_4, window_bounds = array<i64: 1, 32, 8>}, {transform_indices = @transform_5, window_bounds = array<i64: 1, 32, 8>}, {transform_indices = @transform_6, window_bounds = array<i64: 1, 8, 32>}, {transform_indices = @transform_7, window_bounds = array<i64: 1, 8, 32>}, {transform_indices = @transform_8, window_bounds = array<i64: 1, 1, 8, 8>}]} {
    %c0_i32 = arith.constant 0 : i32
    %0 = arith.cmpi eq, %arg2, %c0_i32 : i32
    %1 = arith.extui %0 : i1 to i32
    %c0_i32_0 = arith.constant 0 : i32
    %2 = arith.cmpi ne, %1, %c0_i32_0 : i32
    scf.if %2 {
      %cst_39 = arith.constant 0.000000e+00 : f32
      %45 = vector.broadcast %cst_39 : f32 to vector<8x32xf32>
      %c0_40 = arith.constant 0 : index
      %c0_41 = arith.constant 0 : index
      %46 = vector.load %arg12[%c0_40, %c0_41] : memref<8x32xf32, #tpu.memory_space<vmem>>, vector<8x32xf32>
      tpu.vector_store %arg12[%c0_40, %c0_41], %45 {strides = array<i32>} : memref<8x32xf32, #tpu.memory_space<vmem>>, vector<8x32xf32>,
    } else {
    }
    %c0 = arith.constant 0 : index
    %c0_1 = arith.constant 0 : index
    %c0_2 = arith.constant 0 : index
    %3 = vector.load %arg3[%c0, %c0_1, %c0_2] : memref<1x8x32xf32, #tpu.memory_space<vmem>>, vector<1x8x32xf32>
    %4 = vector.shape_cast %3 : vector<1x8x32xf32> to vector<8x32xf32>
    %c0_3 = arith.constant 0 : index
    %c0_4 = arith.constant 0 : index
    %c0_5 = arith.constant 0 : index
    %5 = vector.load %arg4[%c0_3, %c0_4, %c0_5] : memref<1x8x32xf32, #tpu.memory_space<vmem>>, vector<1x8x32xf32>
    %6 = vector.shape_cast %5 : vector<1x8x32xf32> to vector<8x32xf32>
    %c0_6 = arith.constant 0 : index
    %c0_7 = arith.constant 0 : index
    %c0_8 = arith.constant 0 : index
    %7 = vector.load %arg5[%c0_6, %c0_7, %c0_8] : memref<1x8x32xf32, #tpu.memory_space<vmem>>, vector<1x8x32xf32>
    %8 = vector.shape_cast %7 : vector<1x8x32xf32> to vector<8x32xf32>
    %c0_9 = arith.constant 0 : index
    %c0_10 = arith.constant 0 : index
    %c0_11 = arith.constant 0 : index
    %9 = vector.load %arg6[%c0_9, %c0_10, %c0_11] : memref<1x32x8xf32, #tpu.memory_space<vmem>>, vector<1x32x8xf32>
    %10 = vector.shape_cast %9 : vector<1x32x8xf32> to vector<32x8xf32>
    %cst = arith.constant dense<0.000000e+00> : vector<8x8xf32>
    %11 = tpu.matmul %4, %10, %cst {dimension_numbers = #tpu.dot_dimension_numbers<[1], [0], [0], [1], [0, 0, 1, 1], [], []>} : vector<8x32xf32>, vector<32x8xf32>, vector<8x8xf32> -> vector<8x8xf32>
    %c0_12 = arith.constant 0 : index
    %c0_13 = arith.constant 0 : index
    %c0_14 = arith.constant 0 : index
    %12 = vector.load %arg7[%c0_12, %c0_13, %c0_14] : memref<1x32x8xf32, #tpu.memory_space<vmem>>, vector<1x32x8xf32>
    %13 = vector.shape_cast %12 : vector<1x32x8xf32> to vector<32x8xf32>
    %cst_15 = arith.constant dense<0.000000e+00> : vector<8x8xf32>
    %14 = tpu.matmul %6, %13, %cst_15 {dimension_numbers = #tpu.dot_dimension_numbers<[1], [0], [0], [1], [0, 0, 1, 1], [], []>} : vector<8x32xf32>, vector<32x8xf32>, vector<8x8xf32> -> vector<8x8xf32>
    %c0_16 = arith.constant 0 : index
    %c0_17 = arith.constant 0 : index
    %c0_18 = arith.constant 0 : index
    %15 = vector.load %arg8[%c0_16, %c0_17, %c0_18] : memref<1x32x8xf32, #tpu.memory_space<vmem>>, vector<1x32x8xf32>
    %16 = vector.shape_cast %15 : vector<1x32x8xf32> to vector<32x8xf32>
    %cst_19 = arith.constant dense<0.000000e+00> : vector<8x8xf32>
    %17 = tpu.matmul %8, %16, %cst_19 {dimension_numbers = #tpu.dot_dimension_numbers<[1], [0], [0], [1], [0, 0, 1, 1], [], []>} : vector<8x32xf32>, vector<32x8xf32>, vector<8x8xf32> -> vector<8x8xf32>
    %cst_20 = arith.constant 0.353553385 : f32
    %18 = vector.broadcast %cst_20 : f32 to vector<8x8xf32>
    %19 = arith.mulf %11, %18 : vector<8x8xf32>
    %cst_21 = arith.constant dense<0.000000e+00> : vector<8x8xf32>
    %20 = tpu.matmul %19, %14, %cst_21 {dimension_numbers = #tpu.dot_dimension_numbers<[1], [1], [0], [0], [0, 0, 1, 0], [], []>} : vector<8x8xf32>, vector<8x8xf32>, vector<8x8xf32> -> vector<8x8xf32>
    %cst_22 = arith.constant dense<0xFF800000> : vector<8xf32>
    %21 = vector.multi_reduction <maximumf>, %20, %cst_22 [1] : vector<8x8xf32> to vector<8xf32>
    %22 = vector.shape_cast %21 : vector<8xf32> to vector<8x1xf32>
    %23 = vector.broadcast %22 : vector<8x1xf32> to vector<8x8xf32>
    %24 = arith.subf %20, %23 : vector<8x8xf32>
    %25 = math.exp %24 : vector<8x8xf32>
    %cst_23 = arith.constant dense<0.000000e+00> : vector<8xf32>
    %26 = vector.multi_reduction <add>, %25, %cst_23 [1] : vector<8x8xf32> to vector<8xf32>
    %27 = vector.shape_cast %26 : vector<8xf32> to vector<8x1xf32>
    %cst_24 = arith.constant 1.000000e+00 : f32
    %28 = vector.broadcast %cst_24 : f32 to vector<8x1xf32>
    %29 = arith.divf %28, %27 : vector<8x1xf32>
    %30 = vector.broadcast %29 : vector<8x1xf32> to vector<8x8xf32>
    %31 = arith.mulf %25, %30 : vector<8x8xf32>
    %c0_25 = arith.constant 0 : index
    %c0_26 = arith.constant 0 : index
    %c0_27 = arith.constant 0 : index
    %c0_28 = arith.constant 0 : index
    %32 = vector.load %arg11[%c0_25, %c0_26, %c0_27, %c0_28] : memref<1x1x8x8xf32, #tpu.memory_space<vmem>>, vector<1x1x8x8xf32>
    %33 = vector.shape_cast %32 : vector<1x1x8x8xf32> to vector<8x8xf32>
    %34 = vector.shape_cast %31 : vector<8x8xf32> to vector<1x1x8x8xf32>
    tpu.vector_store %arg11[%c0_25, %c0_26, %c0_27, %c0_28], %34 {strides = array<i32>} : memref<1x1x8x8xf32, #tpu.memory_space<vmem>>, vector<1x1x8x8xf32>,
    %cst_29 = arith.constant dense<0.000000e+00> : vector<8x8xf32>
    %35 = tpu.matmul %31, %17, %cst_29 {dimension_numbers = #tpu.dot_dimension_numbers<[1], [0], [0], [1], [0, 0, 1, 1], [], []>} : vector<8x8xf32>, vector<8x8xf32>, vector<8x8xf32> -> vector<8x8xf32>
    %c0_30 = arith.constant 0 : index
    %c0_31 = arith.constant 0 : index
    %36 = vector.load %arg12[%c0_30, %c0_31] : memref<8x32xf32, #tpu.memory_space<vmem>>, vector<8x32xf32>
    %c0_32 = arith.constant 0 : index
    %c0_33 = arith.constant 0 : index
    %c0_34 = arith.constant 0 : index
    %37 = vector.load %arg9[%c0_32, %c0_33, %c0_34] : memref<1x8x32xf32, #tpu.memory_space<vmem>>, vector<1x8x32xf32>
    %38 = vector.shape_cast %37 : vector<1x8x32xf32> to vector<8x32xf32>
    %cst_35 = arith.constant dense<0.000000e+00> : vector<8x32xf32>
    %39 = tpu.matmul %35, %38, %cst_35 {dimension_numbers = #tpu.dot_dimension_numbers<[1], [0], [0], [1], [0, 0, 1, 1], [], []>} : vector<8x8xf32>, vector<8x32xf32>, vector<8x32xf32> -> vector<8x32xf32>
    %40 = arith.addf %36, %39 : vector<8x32xf32>
    %c0_36 = arith.constant 0 : index
    %c0_37 = arith.constant 0 : index
    %41 = vector.load %arg12[%c0_36, %c0_37] : memref<8x32xf32, #tpu.memory_space<vmem>>, vector<8x32xf32>
    tpu.vector_store %arg12[%c0_36, %c0_37], %40 {strides = array<i32>} : memref<8x32xf32, #tpu.memory_space<vmem>>, vector<8x32xf32>,
    %c3_i32 = arith.constant 3 : i32
    %42 = arith.cmpi eq, %arg2, %c3_i32 : i32
    %43 = arith.extui %42 : i1 to i32
    %c0_i32_38 = arith.constant 0 : i32
    %44 = arith.cmpi ne, %43, %c0_i32_38 : i32
    scf.if %44 {
      %c0_39 = arith.constant 0 : index
      %c0_40 = arith.constant 0 : index
      %45 = vector.load %arg12[%c0_39, %c0_40] : memref<8x32xf32, #tpu.memory_space<vmem>>, vector<8x32xf32>
      %c0_41 = arith.constant 0 : index
      %c0_42 = arith.constant 0 : index
      %c0_43 = arith.constant 0 : index
      %46 = vector.load %arg10[%c0_41, %c0_42, %c0_43] : memref<1x8x32xf32, #tpu.memory_space<vmem>>, vector<1x8x32xf32>
      %47 = vector.shape_cast %46 : vector<1x8x32xf32> to vector<8x32xf32>
      %48 = vector.shape_cast %45 : vector<8x32xf32> to vector<1x8x32xf32>
      tpu.vector_store %arg10[%c0_41, %c0_42, %c0_43], %48 {strides = array<i32>} : memref<1x8x32xf32, #tpu.memory_space<vmem>>, vector<1x8x32xf32>,
    } else {
    }
    return
  }
  func.func @transform_0(%arg0: i32, %arg1: i32, %arg2: i32) -> (i32, i32, i32) {
    %c0_i32 = arith.constant 0 : i32
    %c0_i32_0 = arith.constant 0 : i32
    return %arg0, %arg1, %c0_i32 : i32, i32, i32
  }
  func.func @transform_1(%arg0: i32, %arg1: i32, %arg2: i32) -> (i32, i32, i32) {
    %c0_i32 = arith.constant 0 : i32
    %c0_i32_0 = arith.constant 0 : i32
    %c0_i32_1 = arith.constant 0 : i32
    return %arg0, %c0_i32, %c0_i32_0 : i32, i32, i32
  }
  func.func @transform_2(%arg0: i32, %arg1: i32, %arg2: i32) -> (i32, i32, i32) {
    %c0_i32 = arith.constant 0 : i32
    %c0_i32_0 = arith.constant 0 : i32
    %c0_i32_1 = arith.constant 0 : i32
    return %arg0, %c0_i32, %c0_i32_0 : i32, i32, i32
  }
  func.func @transform_3(%arg0: i32, %arg1: i32, %arg2: i32) -> (i32, i32, i32) {
    %c0_i32 = arith.constant 0 : i32
    %c0_i32_0 = arith.constant 0 : i32
    %c0_i32_1 = arith.constant 0 : i32
    return %arg2, %c0_i32, %c0_i32_0 : i32, i32, i32
  }
  func.func @transform_4(%arg0: i32, %arg1: i32, %arg2: i32) -> (i32, i32, i32) {
    %c0_i32 = arith.constant 0 : i32
    %c0_i32_0 = arith.constant 0 : i32
    %c0_i32_1 = arith.constant 0 : i32
    return %arg2, %c0_i32, %c0_i32_0 : i32, i32, i32
  }
  func.func @transform_5(%arg0: i32, %arg1: i32, %arg2: i32) -> (i32, i32, i32) {
    %c0_i32 = arith.constant 0 : i32
    %c0_i32_0 = arith.constant 0 : i32
    %c0_i32_1 = arith.constant 0 : i32
    return %arg2, %c0_i32, %c0_i32_0 : i32, i32, i32
  }
  func.func @transform_6(%arg0: i32, %arg1: i32, %arg2: i32) -> (i32, i32, i32) {
    %c0_i32 = arith.constant 0 : i32
    %c0_i32_0 = arith.constant 0 : i32
    %c0_i32_1 = arith.constant 0 : i32
    return %arg2, %c0_i32, %c0_i32_0 : i32, i32, i32
  }
  func.func @transform_7(%arg0: i32, %arg1: i32, %arg2: i32) -> (i32, i32, i32) {
    %c0_i32 = arith.constant 0 : i32
    %c0_i32_0 = arith.constant 0 : i32
    return %arg0, %arg1, %c0_i32 : i32, i32, i32
  }
  func.func @transform_8(%arg0: i32, %arg1: i32, %arg2: i32) -> (i32, i32, i32, i32) {
    %c0_i32 = arith.constant 0 : i32
    %c0_i32_0 = arith.constant 0 : i32
    return %arg0, %arg2, %arg1, %c0_i32 : i32, i32, i32, i32
  }
}

</mosaic_0001>

<llo_original>
// kernel: tpu_custom_call.1
$region0: #{tpu_custom_call.1}
  #allocation0 [shape = 'u32[]', space=smem, size = 0x4, offset = 0x4, fixed_abs, tag = 'smem constant byte address 0x4 - core index']
  #allocation1 [shape = 'u32[144,128]{1,0:T(1,128)}', space=vmem, size = 0x12000, scoped, tag = 'internal scratch']
  #allocation2 [shape = 'f32[8,32]{1,0:T(8,128)}', space=vmem, size = 0x1000, scoped, tag = 'scratch operand']
  %s0 = inlined_call_operand.vmem [shape: f32[2,8,32], index: 0, kind: input, shape index: {}]
  %s1 = inlined_call_operand.vmem [shape: f32[2,8,32], index: 1, kind: input, shape index: {}]
  %s2 = inlined_call_operand.vmem [shape: f32[2,8,32], index: 2, kind: input, shape index: {}]
  %s3 = inlined_call_operand.vmem [shape: f32[4,32,8], index: 3, kind: input, shape index: {}]
  %s4 = inlined_call_operand.vmem [shape: f32[4,32,8], index: 4, kind: input, shape index: {}]
  %s5 = inlined_call_operand.vmem [shape: f32[4,32,8], index: 5, kind: input, shape index: {}]
  %s6 = inlined_call_operand.vmem [shape: f32[4,8,32], index: 6, kind: input, shape index: {}]
  %s7 = inlined_call_operand.hbm [shape: f32[2,8,32], index: 7, kind: output, shape index: {0}]
  %s8 = inlined_call_operand.hbm [shape: f32[2,4,8,8], index: 8, kind: output, shape index: {1}]
  %9 = xla_tuple %s7, %s8
  %s10 = sld [smem:[#allocation0]]
  $region77: #{tpu_custom_call.1} parent=0
    _
  %s12 = ssub.s32 1, %s10
  %s13 = scalar_select 0, %s12, %s10
  $region1: #{tpu_custom_call.1} parent=0
    #allocation3 [shape = 'u8[8192]{0}', space=vmem, size = 0x2000, scoped, tag = 'output window, operand 0']
    #allocation4 [shape = 's32[2]{0}', space=sflag, size = 0x8, scoped, tag = 'scoped memory for tpu_custom_call.1']
    #allocation5 [shape = 'u8[8192]{0}', space=vmem, size = 0x2000, scoped, tag = 'output window, operand 1']
    #allocation6 [shape = 's32[2]{0}', space=sflag, size = 0x8, scoped, tag = 'scoped memory for tpu_custom_call.1']
    %14 = vsyncpa [#allocation4], 0
    %s15 = scalar_lea.sflag [#allocation4], 1
    %16 = vsyncpa %s15, 0
    %17 = vsyncpa [#allocation6], 0
    %s18 = scalar_lea.sflag [#allocation6], 1
    %19 = vsyncpa %s18, 0
    loop: start=0, step=1, limit=10
    $region2: #{tpu_custom_call.1} parent=1 // loop_pre_header
      _
    $region3: #{tpu_custom_call.1} parent=1 // loop_header
      %s21 = sphi 0, %s25
      %p22 = scmp.ge.s32.totalorder %s21, 10
      %s28 = sphi 0, %s47
      %s29 = sphi 0, %s43
      %s30 = sphi 0, %s39
      %s31 = sphi 0, %s28
      %s32 = sphi 0, %s29
      %s33 = sphi 0, %s30
      %s34 = sphi 0, %s31
      %s35 = sphi 0, %s32
      %s36 = sphi 0, %s33
      %s52 = sphi 0, %s54
      %s55 = sphi 0, %s52
      %s56 = sphi 0, %s55
      %s72 = sphi 0, %s56
      %s78 = sphi 0, %s80
      %s81 = sphi 0, %s78
      %s82 = sphi 0, %s81
      %s98 = sphi 0, %s82
      %s104 = sphi 0, %s106
      %s107 = sphi 0, %s104
      %s108 = sphi 0, %s107
      %s124 = sphi 0, %s108
      %s130 = sphi 0, %s132
      %s133 = sphi 0, %s130
      %s134 = sphi 0, %s133
      %s150 = sphi 0, %s134
      %s156 = sphi 0, %s158
      %s159 = sphi 0, %s156
      %s160 = sphi 0, %s159
      %s176 = sphi 0, %s160
      %s182 = sphi 0, %s184
      %s185 = sphi 0, %s182
      %s186 = sphi 0, %s185
      %s202 = sphi 0, %s186
      %s208 = sphi 0, %s210
      %s211 = sphi 0, %s208
      %s212 = sphi 0, %s211
      %s228 = sphi 0, %s212
      %s236 = sphi 0, %s238
      %s239 = sphi 0, %s236
      %s240 = sphi 0, %s239
      %s256 = sphi 0, %s240
      %s266 = sphi 0, %s268
      %s269 = sphi 0, %s266
      %s270 = sphi 0, %s269
      %s286 = sphi 0, %s270
    $region4: #{tpu_custom_call.1} parent=1 // loop_header_branch
      %24 = sbr.rel (%p22) target = $region8
    $region5: #{tpu_custom_call.1} parent=1 // loop_body
      %s26 = ssub.s32 %s21, 1
      %s27 = ssub.s32 %s21, 2
      %s37 = sadd.s32 1, %s30
      %p38 = scmp.ge.s32.totalorder %s37, 4
      %s39 = scalar_select %p38, 0, %s37
      %s40 = sadd.s32 1, %s29
      %s41 = scalar_select %p38, %s40, %s29
      %p42 = scmp.ge.s32.totalorder %s41, 1
      %s43 = scalar_select %p42, 0, %s41
      %s44 = sadd.s32 1, %s28
      %s45 = scalar_select %p42, %s44, %s28
      %p46 = scmp.ge.s32.totalorder %s45, 2
      %s47 = scalar_select %p46, 0, %s45
      %s48 = ssub.s32 %s28, %s47
      %s49 = ssub.s32 %s29, %s43
      %s50 = sor.u32 %s48, %s49
      %p51 = scmp.eq.s32.totalorder %s50, 0
      %s53 = sadd.s32 %s52, 1
      %s54 = scalar_select %p51, %s52, %s53
      %p57 = pneg %p51
      %p58 = scmp.eq.s32.totalorder %s21, 7
      %p59 = por %p57, %p58
      %p60 = scmp.ne.s32.totalorder %s52, %s55
      %p61 = scmp.eq.s32.totalorder %s21, 0
      %p62 = por %p60, %p61
      %p63 = scmp.ne.s32.totalorder %s52, %s55
      %p64 = scmp.eq.s32.totalorder %s26, 7
      %p65 = por %p63, %p64
      %p66 = scmp.ne.s32.totalorder %s55, %s56
      %p67 = scmp.eq.s32.totalorder %s26, 0
      %p68 = por %p66, %p67
      %p69 = scmp.ne.s32.totalorder %s55, %s56
      %p70 = scmp.eq.s32.totalorder %s27, 7
      %p71 = por %p69, %p70
      %p73 = scmp.ne.s32.totalorder %s56, %s72
      %p74 = scmp.eq.s32.totalorder %s27, 0
      %p75 = por %p73, %p74
      %s76 = ssub.s32 %s28, %s47
      %p77 = scmp.eq.s32.totalorder %s76, 0
      %s79 = sadd.s32 %s78, 1
      %s80 = scalar_select %p77, %s78, %s79
      %p83 = pneg %p77
      %p84 = scmp.eq.s32.totalorder %s21, 7
      %p85 = por %p83, %p84
      %p86 = scmp.ne.s32.totalorder %s78, %s81
      %p87 = scmp.eq.s32.totalorder %s21, 0
      %p88 = por %p86, %p87
      %p89 = scmp.ne.s32.totalorder %s78, %s81
      %p90 = scmp.eq.s32.totalorder %s26, 7
      %p91 = por %p89, %p90
      %p92 = scmp.ne.s32.totalorder %s81, %s82
      %p93 = scmp.eq.s32.totalorder %s26, 0
      %p94 = por %p92, %p93
      %p95 = scmp.ne.s32.totalorder %s81, %s82
      %p96 = scmp.eq.s32.totalorder %s27, 7
      %p97 = por %p95, %p96
      %p99 = scmp.ne.s32.totalorder %s82, %s98
      %p100 = scmp.eq.s32.totalorder %s27, 0
      %p101 = por %p99, %p100
      %s102 = ssub.s32 %s28, %s47
      %p103 = scmp.eq.s32.totalorder %s102, 0
      %s105 = sadd.s32 %s104, 1
      %s106 = scalar_select %p103, %s104, %s105
      %p109 = pneg %p103
      %p110 = scmp.eq.s32.totalorder %s21, 7
      %p111 = por %p109, %p110
      %p112 = scmp.ne.s32.totalorder %s104, %s107
      %p113 = scmp.eq.s32.totalorder %s21, 0
      %p114 = por %p112, %p113
      %p115 = scmp.ne.s32.totalorder %s104, %s107
      %p116 = scmp.eq.s32.totalorder %s26, 7
      %p117 = por %p115, %p116
      %p118 = scmp.ne.s32.totalorder %s107, %s108
      %p119 = scmp.eq.s32.totalorder %s26, 0
      %p120 = por %p118, %p119
      %p121 = scmp.ne.s32.totalorder %s107, %s108
      %p122 = scmp.eq.s32.totalorder %s27, 7
      %p123 = por %p121, %p122
      %p125 = scmp.ne.s32.totalorder %s108, %s124
      %p126 = scmp.eq.s32.totalorder %s27, 0
      %p127 = por %p125, %p126
      %s128 = ssub.s32 %s30, %s39
      %p129 = scmp.eq.s32.totalorder %s128, 0
      %s131 = sadd.s32 %s130, 1
      %s132 = scalar_select %p129, %s130, %s131
      %p135 = pneg %p129
      %p136 = scmp.eq.s32.totalorder %s21, 7
      %p137 = por %p135, %p136
      %p138 = scmp.ne.s32.totalorder %s130, %s133
      %p139 = scmp.eq.s32.totalorder %s21, 0
      %p140 = por %p138, %p139
      %p141 = scmp.ne.s32.totalorder %s130, %s133
      %p142 = scmp.eq.s32.totalorder %s26, 7
      %p143 = por %p141, %p142
      %p144 = scmp.ne.s32.totalorder %s133, %s134
      %p145 = scmp.eq.s32.totalorder %s26, 0
      %p146 = por %p144, %p145
      %p147 = scmp.ne.s32.totalorder %s133, %s134
      %p148 = scmp.eq.s32.totalorder %s27, 7
      %p149 = por %p147, %p148
      %p151 = scmp.ne.s32.totalorder %s134, %s150
      %p152 = scmp.eq.s32.totalorder %s27, 0
      %p153 = por %p151, %p152
      %s154 = ssub.s32 %s30, %s39
      %p155 = scmp.eq.s32.totalorder %s154, 0
      %s157 = sadd.s32 %s156, 1
      %s158 = scalar_select %p155, %s156, %s157
      %p161 = pneg %p155
      %p162 = scmp.eq.s32.totalorder %s21, 7
      %p163 = por %p161, %p162
      %p164 = scmp.ne.s32.totalorder %s156, %s159
      %p165 = scmp.eq.s32.totalorder %s21, 0
      %p166 = por %p164, %p165
      %p167 = scmp.ne.s32.totalorder %s156, %s159
      %p168 = scmp.eq.s32.totalorder %s26, 7
      %p169 = por %p167, %p168
      %p170 = scmp.ne.s32.totalorder %s159, %s160
      %p171 = scmp.eq.s32.totalorder %s26, 0
      %p172 = por %p170, %p171
      %p173 = scmp.ne.s32.totalorder %s159, %s160
      %p174 = scmp.eq.s32.totalorder %s27, 7
      %p175 = por %p173, %p174
      %p177 = scmp.ne.s32.totalorder %s160, %s176
      %p178 = scmp.eq.s32.totalorder %s27, 0
      %p179 = por %p177, %p178
      %s180 = ssub.s32 %s30, %s39
      %p181 = scmp.eq.s32.totalorder %s180, 0
      %s183 = sadd.s32 %s182, 1
      %s184 = scalar_select %p181, %s182, %s183
      %p187 = pneg %p181
      %p188 = scmp.eq.s32.totalorder %s21, 7
      %p189 = por %p187, %p188
      %p190 = scmp.ne.s32.totalorder %s182, %s185
      %p191 = scmp.eq.s32.totalorder %s21, 0
      %p192 = por %p190, %p191
      %p193 = scmp.ne.s32.totalorder %s182, %s185
      %p194 = scmp.eq.s32.totalorder %s26, 7
      %p195 = por %p193, %p194
      %p196 = scmp.ne.s32.totalorder %s185, %s186
      %p197 = scmp.eq.s32.totalorder %s26, 0
      %p198 = por %p196, %p197
      %p199 = scmp.ne.s32.totalorder %s185, %s186
      %p200 = scmp.eq.s32.totalorder %s27, 7
      %p201 = por %p199, %p200
      %p203 = scmp.ne.s32.totalorder %s186, %s202
      %p204 = scmp.eq.s32.totalorder %s27, 0
      %p205 = por %p203, %p204
      %s206 = ssub.s32 %s30, %s39
      %p207 = scmp.eq.s32.totalorder %s206, 0
      %s209 = sadd.s32 %s208, 1
      %s210 = scalar_select %p207, %s208, %s209
      %p213 = pneg %p207
      %p214 = scmp.eq.s32.totalorder %s21, 7
      %p215 = por %p213, %p214
      %p216 = scmp.ne.s32.totalorder %s208, %s211
      %p217 = scmp.eq.s32.totalorder %s21, 0
      %p218 = por %p216, %p217
      %p219 = scmp.ne.s32.totalorder %s208, %s211
      %p220 = scmp.eq.s32.totalorder %s26, 7
      %p221 = por %p219, %p220
      %p222 = scmp.ne.s32.totalorder %s211, %s212
      %p223 = scmp.eq.s32.totalorder %s26, 0
      %p224 = por %p222, %p223
      %p225 = scmp.ne.s32.totalorder %s211, %s212
      %p226 = scmp.eq.s32.totalorder %s27, 7
      %p227 = por %p225, %p226
      %p229 = scmp.ne.s32.totalorder %s212, %s228
      %p230 = scmp.eq.s32.totalorder %s27, 0
      %p231 = por %p229, %p230
      %s232 = ssub.s32 %s28, %s47
      %s233 = ssub.s32 %s29, %s43
      %s234 = sor.u32 %s232, %s233
      %p235 = scmp.eq.s32.totalorder %s234, 0
      %s237 = sadd.s32 %s236, 1
      %s238 = scalar_select %p235, %s236, %s237
      %p241 = pneg %p235
      %p242 = scmp.eq.s32.totalorder %s21, 7
      %p243 = por %p241, %p242
      %p244 = scmp.ne.s32.totalorder %s236, %s239
      %p245 = scmp.eq.s32.totalorder %s21, 0
      %p246 = por %p244, %p245
      %p247 = scmp.ne.s32.totalorder %s236, %s239
      %p248 = scmp.eq.s32.totalorder %s26, 7
      %p249 = por %p247, %p248
      %p250 = scmp.ne.s32.totalorder %s239, %s240
      %p251 = scmp.eq.s32.totalorder %s26, 0
      %p252 = por %p250, %p251
      %p253 = scmp.ne.s32.totalorder %s239, %s240
      %p254 = scmp.eq.s32.totalorder %s27, 7
      %p255 = por %p253, %p254
      %p257 = scmp.ne.s32.totalorder %s240, %s256
      %p258 = scmp.eq.s32.totalorder %s27, 0
      %p259 = por %p257, %p258
      %s260 = ssub.s32 %s28, %s47
      %s261 = ssub.s32 %s30, %s39
      %s262 = sor.u32 %s260, %s261
      %s263 = ssub.s32 %s29, %s43
      %s264 = sor.u32 %s262, %s263
      %p265 = scmp.eq.s32.totalorder %s264, 0
      %s267 = sadd.s32 %s266, 1
      %s268 = scalar_select %p265, %s266, %s267
      %p271 = pneg %p265
      %p272 = scmp.eq.s32.totalorder %s21, 7
      %p273 = por %p271, %p272
      %p274 = scmp.ne.s32.totalorder %s266, %s269
      %p275 = scmp.eq.s32.totalorder %s21, 0
      %p276 = por %p274, %p275
      %p277 = scmp.ne.s32.totalorder %s266, %s269
      %p278 = scmp.eq.s32.totalorder %s26, 7
      %p279 = por %p277, %p278
      %p280 = scmp.ne.s32.totalorder %s269, %s270
      %p281 = scmp.eq.s32.totalorder %s26, 0
      %p282 = por %p280, %p281
      %p283 = scmp.ne.s32.totalorder %s269, %s270
      %p284 = scmp.eq.s32.totalorder %s27, 7
      %p285 = por %p283, %p284
      %p287 = scmp.ne.s32.totalorder %s270, %s286
      %p288 = scmp.eq.s32.totalorder %s27, 0
      %p289 = por %p287, %p288
      %p290 = scmp.le.s32.totalorder 1, %s21
      %p291 = scmp.lt.s32.totalorder %s21, 9
      %p292 = pnand %p290, %p291
      %p293 = pneg %p292
      // Predicated region
      $region9: #{tpu_custom_call.1} parent=5 // pred_check
        _
      $region10: #{tpu_custom_call.1} parent=5 // pred_check_branch
        %295 = sbr.rel (%p292) target = $region12
      $region11: #{tpu_custom_call.1} parent=5 // pred_region
        %s296 = ssub.s32 %s21, 1
      $region12: #{tpu_custom_call.1} parent=5 // pred_fallthru
        _
      %p297 = scmp.lt.s32.totalorder %s21, 8
      // Predicated region
      $region13: #{tpu_custom_call.1} parent=5 // pred_check
        %p298 = pneg %p297
      $region14: #{tpu_custom_call.1} parent=5 // pred_check_branch
        %300 = sbr.rel (%p298) target = $region16
      $region15: #{tpu_custom_call.1} parent=5 // pred_region
        // Predicated region
        $region17: #{tpu_custom_call.1} parent=15 // pred_check
          %p301 = pneg %p62
        $region18: #{tpu_custom_call.1} parent=15 // pred_check_branch
          %303 = sbr.rel (%p301) target = $region20
        $region19: #{tpu_custom_call.1} parent=15 // pred_region
          %p304 = scmp.lt.s32.totalorder %s28, 1
          %s305 = scalar_select %p304, %s28, 1
          %p306 = scmp.lt.s32.totalorder %s29, 0
          %s307 = scalar_select %p306, %s29, 0
          %s308 = sadd.s32 %s307, %s305
          %s309 = smul.addr %s308, 8
          %s310 = scalar_lea.vmem %s0, %s309
        $region20: #{tpu_custom_call.1} parent=15 // pred_fallthru
          _
        // Predicated region
        $region21: #{tpu_custom_call.1} parent=15 // pred_check
          %p311 = pneg %p88
        $region22: #{tpu_custom_call.1} parent=15 // pred_check_branch
          %313 = sbr.rel (%p311) target = $region24
        $region23: #{tpu_custom_call.1} parent=15 // pred_region
          %p314 = scmp.lt.s32.totalorder %s28, 1
          %s315 = scalar_select %p314, %s28, 1
          %s316 = smul.addr %s315, 8
          %s317 = scalar_lea.vmem %s1, %s316
        $region24: #{tpu_custom_call.1} parent=15 // pred_fallthru
          _
        // Predicated region
        $region25: #{tpu_custom_call.1} parent=15 // pred_check
          %p318 = pneg %p114
        $region26: #{tpu_custom_call.1} parent=15 // pred_check_branch
          %320 = sbr.rel (%p318) target = $region28
        $region27: #{tpu_custom_call.1} parent=15 // pred_region
          %p321 = scmp.lt.s32.totalorder %s28, 1
          %s322 = scalar_select %p321, %s28, 1
          %s323 = smul.addr %s322, 8
          %s324 = scalar_lea.vmem %s2, %s323
        $region28: #{tpu_custom_call.1} parent=15 // pred_fallthru
          _
        // Predicated region
        $region29: #{tpu_custom_call.1} parent=15 // pred_check
          %p325 = pneg %p140
        $region30: #{tpu_custom_call.1} parent=15 // pred_check_branch
          %327 = sbr.rel (%p325) target = $region32
        $region31: #{tpu_custom_call.1} parent=15 // pred_region
          %p328 = scmp.lt.s32.totalorder %s30, 3
          %s329 = scalar_select %p328, %s30, 3
          %s330 = smul.addr %s329, 4
          %s331 = smul.addr %s330, 8
          %s332 = scalar_lea.vmem %s3, %s331
        $region32: #{tpu_custom_call.1} parent=15 // pred_fallthru
          _
        // Predicated region
        $region33: #{tpu_custom_call.1} parent=15 // pred_check
          %p333 = pneg %p166
        $region34: #{tpu_custom_call.1} parent=15 // pred_check_branch
          %335 = sbr.rel (%p333) target = $region36
        $region35: #{tpu_custom_call.1} parent=15 // pred_region
          %p336 = scmp.lt.s32.totalorder %s30, 3
          %s337 = scalar_select %p336, %s30, 3
          %s338 = smul.addr %s337, 4
          %s339 = smul.addr %s338, 8
          %s340 = scalar_lea.vmem %s4, %s339
        $region36: #{tpu_custom_call.1} parent=15 // pred_fallthru
          _
        // Predicated region
        $region37: #{tpu_custom_call.1} parent=15 // pred_check
          %p341 = pneg %p192
        $region38: #{tpu_custom_call.1} parent=15 // pred_check_branch
          %343 = sbr.rel (%p341) target = $region40
        $region39: #{tpu_custom_call.1} parent=15 // pred_region
          %p344 = scmp.lt.s32.totalorder %s30, 3
          %s345 = scalar_select %p344, %s30, 3
          %s346 = smul.addr %s345, 4
          %s347 = smul.addr %s346, 8
          %s348 = scalar_lea.vmem %s5, %s347
        $region40: #{tpu_custom_call.1} parent=15 // pred_fallthru
          _
        // Predicated region
        $region41: #{tpu_custom_call.1} parent=15 // pred_check
          %p349 = pneg %p218
        $region42: #{tpu_custom_call.1} parent=15 // pred_check_branch
          %351 = sbr.rel (%p349) target = $region44
        $region43: #{tpu_custom_call.1} parent=15 // pred_region
          %p352 = scmp.lt.s32.totalorder %s30, 3
          %s353 = scalar_select %p352, %s30, 3
          %s354 = smul.addr %s353, 8
          %s355 = scalar_lea.vmem %s6, %s354
        $region44: #{tpu_custom_call.1} parent=15 // pred_fallthru
          _
      $region16: #{tpu_custom_call.1} parent=5 // pred_fallthru
        _
      %p356 = scmp.le.s32.totalorder 1, %s21
      %p357 = scmp.lt.s32.totalorder %s21, 9
      %p358 = pnand %p356, %p357
      %p359 = pneg %p358
      // Predicated region
      $region45: #{tpu_custom_call.1} parent=5 // pred_check
        _
      $region46: #{tpu_custom_call.1} parent=5 // pred_check_branch
        %361 = sbr.rel (%p358) target = $region48
      $region47: #{tpu_custom_call.1} parent=5 // pred_region
        %s362 = ssub.s32 %s21, 1
        %p363 = scmp.lt.s32.totalorder %s31, 1
        %s364 = scalar_select %p363, %s31, 1
        %p365 = scmp.lt.s32.totalorder %s32, 0
        %s366 = scalar_select %p365, %s32, 0
        %s367 = sadd.s32 %s366, %s364
        %s368 = smul.addr %s367, 8
        %s369 = scalar_lea.vmem %s0, %s368
        %p370 = pneg %p68
        %p371 = pneg %p65
        %p372 = scmp.lt.s32.totalorder %s31, 1
        %s373 = scalar_select %p372, %s31, 1
        %s374 = smul.addr %s373, 8
        %s375 = scalar_lea.vmem %s1, %s374
        %p376 = pneg %p94
        %p377 = pneg %p91
        %p378 = scmp.lt.s32.totalorder %s31, 1
        %s379 = scalar_select %p378, %s31, 1
        %s380 = smul.addr %s379, 8
        %s381 = scalar_lea.vmem %s2, %s380
        %p382 = pneg %p120
        %p383 = pneg %p117
        %p384 = scmp.lt.s32.totalorder %s33, 3
        %s385 = scalar_select %p384, %s33, 3
        %s386 = smul.addr %s385, 4
        %s387 = smul.addr %s386, 8
        %s388 = scalar_lea.vmem %s3, %s387
        %p389 = pneg %p146
        %p390 = pneg %p143
        %p391 = scmp.lt.s32.totalorder %s33, 3
        %s392 = scalar_select %p391, %s33, 3
        %s393 = smul.addr %s392, 4
        %s394 = smul.addr %s393, 8
        %s395 = scalar_lea.vmem %s4, %s394
        %p396 = pneg %p172
        %p397 = pneg %p169
        %p398 = scmp.lt.s32.totalorder %s33, 3
        %s399 = scalar_select %p398, %s33, 3
        %s400 = smul.addr %s399, 4
        %s401 = smul.addr %s400, 8
        %s402 = scalar_lea.vmem %s5, %s401
        %p403 = pneg %p198
        %p404 = pneg %p195
        %p405 = scmp.lt.s32.totalorder %s33, 3
        %s406 = scalar_select %p405, %s33, 3
        %s407 = smul.addr %s406, 8
        %s408 = scalar_lea.vmem %s6, %s407
        %p409 = pneg %p224
        %p410 = pneg %p221
        %p411 = pneg %p252
        %p412 = pneg %p249
        %s413 = sand.u32 %s239, 1
        %s414 = scalar_lea.sflag [#allocation4], %s413
        %s415 = sand.u32 %s239, 1
        %s416 = smul.addr %s415, 8
        %s417 = scalar_lea.vmem [#allocation3], %s416
        %p418 = pneg %p282
        %p419 = pneg %p279
        %s420 = sand.u32 %s269, 1
        %s421 = scalar_lea.sflag [#allocation6], %s420
        %s422 = sand.u32 %s269, 1
        %s423 = smul.addr %s422, 8
        %s424 = scalar_lea.vmem [#allocation5], %s423
        %p425 = scmp.lt.s32.totalorder %s31, 1
        %s426 = scalar_select %p425, %s31, 1
        %p427 = scmp.lt.s32.totalorder %s32, 0
        %s428 = scalar_select %p427, %s32, 0
        %s429 = sadd.s32 %s428, %s426
        %s430 = smul.addr %s429, 8
        %s431 = scalar_lea.vmem %s0, %s430
        %p432 = scmp.lt.s32.totalorder %s31, 1
        %s433 = scalar_select %p432, %s31, 1
        %s434 = smul.addr %s433, 8
        %s435 = scalar_lea.vmem %s1, %s434
        %p436 = scmp.lt.s32.totalorder %s31, 1
        %s437 = scalar_select %p436, %s31, 1
        %s438 = smul.addr %s437, 8
        %s439 = scalar_lea.vmem %s2, %s438
        %p440 = scmp.lt.s32.totalorder %s33, 3
        %s441 = scalar_select %p440, %s33, 3
        %s442 = smul.addr %s441, 4
        %s443 = smul.addr %s442, 8
        %s444 = scalar_lea.vmem %s3, %s443
        %p445 = scmp.lt.s32.totalorder %s33, 3
        %s446 = scalar_select %p445, %s33, 3
        %s447 = smul.addr %s446, 4
        %s448 = smul.addr %s447, 8
        %s449 = scalar_lea.vmem %s4, %s448
        %p450 = scmp.lt.s32.totalorder %s33, 3
        %s451 = scalar_select %p450, %s33, 3
        %s452 = smul.addr %s451, 4
        %s453 = smul.addr %s452, 8
        %s454 = scalar_lea.vmem %s5, %s453
        %p455 = scmp.lt.s32.totalorder %s33, 3
        %s456 = scalar_select %p455, %s33, 3
        %s457 = smul.addr %s456, 8
        %s458 = scalar_lea.vmem %s6, %s457
        %p459 = scmp.eq.s32.totalorder %s33, 0
        // Predicated region
        $region49: #{tpu_custom_call.1} parent=47 // pred_check
          %p460 = pneg %p459
        $region50: #{tpu_custom_call.1} parent=47 // pred_check_branch
          %462 = sbr.rel (%p460) target = $region52
        $region51: #{tpu_custom_call.1} parent=47 // pred_region
          %vm463 = vcmask 261120
          %464 = vst.msk [vmem:[#allocation2] sm:$0xff] %vm463, 0.0
        $region52: #{tpu_custom_call.1} parent=47 // pred_fallthru
          _
        %v465 = vld [vmem:[%s431] sm:$0xff]
        %v466 = vld [vmem:[%s435] sm:$0xff]
        %v467 = vld [vmem:[%s439] sm:$0xff]
        %v468 = vld [vmem:[%s444] sm:$0xff]
        %v469 = vld [vmem:[%s444 + $0x8] sm:$0xff]
        %v470 = vld [vmem:[%s444 + $0x10] sm:$0xff]
        %v471 = vld [vmem:[%s444 + $0x18] sm:$0xff]
        %vm472 = vcmask 261120
        %v474 = vsel %vm472, %v465, 0
        %476 = vmatprep.subr.mxu0 0.0
        %477 = vmatpush1.msra.mxu0 %v468
        %478 = vmatprep.subr.mxu0 0.0
        %479 = vmatpush1.msra.mxu0 %v469
        %480 = vmatprep.subr.mxu0 0.0
        %481 = vmatpush1.msra.mxu0 %v470
        %482 = vmatprep.subr.mxu0 0.0
        %483 = vmatpush1.msra.mxu0 %v471
        %484 = vmatprep.subr.mxu0 0.0
        %485 = vmatpush1.msra.mxu0 0.0
        %486 = vmatprep.subr.mxu0 0.0
        %487 = vmatpush1.msra.mxu0 0.0
        %488 = vmatprep.subr.mxu0 0.0
        %489 = vmatpush1.msra.mxu0 0.0
        %490 = vmatprep.subr.mxu0 0.0
        %491 = vmatpush1.msra.mxu0 0.0
        %492 = vmatprep.subr.mxu0 0.0
        %493 = vmatpush1.msra.mxu0 0.0
        %494 = vmatprep.subr.mxu0 0.0
        %495 = vmatpush1.msra.mxu0 0.0
        %496 = vmatprep.subr.mxu0 0.0
        %497 = vmatpush1.msra.mxu0 0.0
        %498 = vmatprep.subr.mxu0 0.0
        %499 = vmatpush1.msra.mxu0 0.0
        %500 = vmatprep.subr.mxu0 0.0
        %501 = vmatpush1.msra.mxu0 0.0
        %502 = vmatprep.subr.mxu0 0.0
        %503 = vmatpush1.msra.mxu0 0.0
        %504 = vmatprep.subr.mxu0 0.0
        %505 = vmatpush1.msra.mxu0 0.0
        %506 = vmatprep.subr.mxu0 0.0
        %507 = vmatpush1.msra.mxu0 0.0
        %508 = vmatprep.subr.mxu0 0.0
        %509 = vmatpush1.msra.mxu0 0.0
        %510 = vmatprep.subr.mxu0 0.0
        %511 = vmatpush1.msra.mxu0 0.0
        %512 = vmatprep.subr.mxu0 0.0
        %513 = vmatpush1.msra.mxu0 0.0
        %514 = vmatprep.subr.mxu0 0.0
        %515 = vmatpush1.msra.mxu0 0.0
        %516 = vmatprep.subr.mxu0 0.0
        %517 = vmatpush1.msra.mxu0 0.0
        %518 = vmatprep.subr.mxu0 0.0
        %519 = vmatpush1.msra.mxu0 0.0
        %520 = vmatprep.subr.mxu0 0.0
        %521 = vmatpush1.msra.mxu0 0.0
        %522 = vmatprep.subr.mxu0 0.0
        %523 = vmatpush1.msra.mxu0 0.0
        %524 = vmatprep.subr.mxu0 0.0
        %525 = vmatpush1.msra.mxu0 0.0
        %526 = vmatprep.subr.mxu0 0.0
        %527 = vmatpush1.msra.mxu0 0.0
        %528 = vmatprep.subr.mxu0 0.0
        %529 = vmatpush1.msra.mxu0 0.0
        %530 = vmatprep.subr.mxu0 0.0
        %531 = vmatpush1.msra.mxu0 0.0
        %532 = vmatprep.subr.mxu0 0.0
        %533 = vmatpush1.msra.mxu0 0.0
        %534 = vmatprep.subr.mxu0 0.0
        %535 = vmatpush1.msra.mxu0 0.0
        %536 = vmatprep.subr.mxu0 0.0
        %537 = vmatpush1.msra.mxu0 0.0
        %538 = vmatprep.subr.mxu0 0.0
        %539 = vmatpush1.msra.mxu0 0.0
        %540 = vmatprep.mubr.f32.mxu0 0.0
        %541 = vmatmul.mubr.f32.gmra.mrb[0].mxu0 %v474
        %v542 = vpop.f32.mrb[0].mxu0
        %v543 = vadd.f32 0.0, %v542
        %v544 = vpop.f32.mrb[0].mxu0
        %545 = vdwg.mxu0
        %v546 = vld [vmem:[%s449] sm:$0xff]
        %v547 = vld [vmem:[%s449 + $0x8] sm:$0xff]
        %v548 = vld [vmem:[%s449 + $0x10] sm:$0xff]
        %v549 = vld [vmem:[%s449 + $0x18] sm:$0xff]
        %v551 = vsel %vm472, %v466, 0
        %553 = vmatprep.subr.mxu0 0.0
        %554 = vmatpush1.msra.mxu0 %v546
        %555 = vmatprep.subr.mxu0 0.0
        %556 = vmatpush1.msra.mxu0 %v547
        %557 = vmatprep.subr.mxu0 0.0
        %558 = vmatpush1.msra.mxu0 %v548
        %559 = vmatprep.subr.mxu0 0.0
        %560 = vmatpush1.msra.mxu0 %v549
        %561 = vmatprep.subr.mxu0 0.0
        %562 = vmatpush1.msra.mxu0 0.0
        %563 = vmatprep.subr.mxu0 0.0
        %564 = vmatpush1.msra.mxu0 0.0
        %565 = vmatprep.subr.mxu0 0.0
        %566 = vmatpush1.msra.mxu0 0.0
        %567 = vmatprep.subr.mxu0 0.0
        %568 = vmatpush1.msra.mxu0 0.0
        %569 = vmatprep.subr.mxu0 0.0
        %570 = vmatpush1.msra.mxu0 0.0
        %571 = vmatprep.subr.mxu0 0.0
        %572 = vmatpush1.msra.mxu0 0.0
        %573 = vmatprep.subr.mxu0 0.0
        %574 = vmatpush1.msra.mxu0 0.0
        %575 = vmatprep.subr.mxu0 0.0
        %576 = vmatpush1.msra.mxu0 0.0
        %577 = vmatprep.subr.mxu0 0.0
        %578 = vmatpush1.msra.mxu0 0.0
        %579 = vmatprep.subr.mxu0 0.0
        %580 = vmatpush1.msra.mxu0 0.0
        %581 = vmatprep.subr.mxu0 0.0
        %582 = vmatpush1.msra.mxu0 0.0
        %583 = vmatprep.subr.mxu0 0.0
        %584 = vmatpush1.msra.mxu0 0.0
        %585 = vmatprep.subr.mxu0 0.0
        %586 = vmatpush1.msra.mxu0 0.0
        %587 = vmatprep.subr.mxu0 0.0
        %588 = vmatpush1.msra.mxu0 0.0
        %589 = vmatprep.subr.mxu0 0.0
        %590 = vmatpush1.msra.mxu0 0.0
        %591 = vmatprep.subr.mxu0 0.0
        %592 = vmatpush1.msra.mxu0 0.0
        %593 = vmatprep.subr.mxu0 0.0
        %594 = vmatpush1.msra.mxu0 0.0
        %595 = vmatprep.subr.mxu0 0.0
        %596 = vmatpush1.msra.mxu0 0.0
        %597 = vmatprep.subr.mxu0 0.0
        %598 = vmatpush1.msra.mxu0 0.0
        %599 = vmatprep.subr.mxu0 0.0
        %600 = vmatpush1.msra.mxu0 0.0
        %601 = vmatprep.subr.mxu0 0.0
        %602 = vmatpush1.msra.mxu0 0.0
        %603 = vmatprep.subr.mxu0 0.0
        %604 = vmatpush1.msra.mxu0 0.0
        %605 = vmatprep.subr.mxu0 0.0
        %606 = vmatpush1.msra.mxu0 0.0
        %607 = vmatprep.subr.mxu0 0.0
        %608 = vmatpush1.msra.mxu0 0.0
        %609 = vmatprep.subr.mxu0 0.0
        %610 = vmatpush1.msra.mxu0 0.0
        %611 = vmatprep.subr.mxu0 0.0
        %612 = vmatpush1.msra.mxu0 0.0
        %613 = vmatprep.subr.mxu0 0.0
        %614 = vmatpush1.msra.mxu0 0.0
        %615 = vmatprep.subr.mxu0 0.0
        %616 = vmatpush1.msra.mxu0 0.0
        %617 = vmatprep.mubr.f32.mxu0 0.0
        %618 = vmatmul.mubr.f32.gmra.mrb[0].mxu0 %v551
        %v619 = vpop.f32.mrb[0].mxu0
        %v620 = vadd.f32 0.0, %v619
        %v621 = vpop.f32.mrb[0].mxu0
        %622 = vdwg.mxu0
        %v623 = vld [vmem:[%s454] sm:$0xff]
        %v624 = vld [vmem:[%s454 + $0x8] sm:$0xff]
        %v625 = vld [vmem:[%s454 + $0x10] sm:$0xff]
        %v626 = vld [vmem:[%s454 + $0x18] sm:$0xff]
        %v628 = vsel %vm472, %v467, 0
        %630 = vmatprep.subr.mxu0 0.0
        %631 = vmatpush1.msra.mxu0 %v623
        %632 = vmatprep.subr.mxu0 0.0
        %633 = vmatpush1.msra.mxu0 %v624
        %634 = vmatprep.subr.mxu0 0.0
        %635 = vmatpush1.msra.mxu0 %v625
        %636 = vmatprep.subr.mxu0 0.0
        %637 = vmatpush1.msra.mxu0 %v626
        %638 = vmatprep.subr.mxu0 0.0
        %639 = vmatpush1.msra.mxu0 0.0
        %640 = vmatprep.subr.mxu0 0.0
        %641 = vmatpush1.msra.mxu0 0.0
        %642 = vmatprep.subr.mxu0 0.0
        %643 = vmatpush1.msra.mxu0 0.0
        %644 = vmatprep.subr.mxu0 0.0
        %645 = vmatpush1.msra.mxu0 0.0
        %646 = vmatprep.subr.mxu0 0.0
        %647 = vmatpush1.msra.mxu0 0.0
        %648 = vmatprep.subr.mxu0 0.0
        %649 = vmatpush1.msra.mxu0 0.0
        %650 = vmatprep.subr.mxu0 0.0
        %651 = vmatpush1.msra.mxu0 0.0
        %652 = vmatprep.subr.mxu0 0.0
        %653 = vmatpush1.msra.mxu0 0.0
        %654 = vmatprep.subr.mxu0 0.0
        %655 = vmatpush1.msra.mxu0 0.0
        %656 = vmatprep.subr.mxu0 0.0
        %657 = vmatpush1.msra.mxu0 0.0
        %658 = vmatprep.subr.mxu0 0.0
        %659 = vmatpush1.msra.mxu0 0.0
        %660 = vmatprep.subr.mxu0 0.0
        %661 = vmatpush1.msra.mxu0 0.0
        %662 = vmatprep.subr.mxu0 0.0
        %663 = vmatpush1.msra.mxu0 0.0
        %664 = vmatprep.subr.mxu0 0.0
        %665 = vmatpush1.msra.mxu0 0.0
        %666 = vmatprep.subr.mxu0 0.0
        %667 = vmatpush1.msra.mxu0 0.0
        %668 = vmatprep.subr.mxu0 0.0
        %669 = vmatpush1.msra.mxu0 0.0
        %670 = vmatprep.subr.mxu0 0.0
        %671 = vmatpush1.msra.mxu0 0.0
        %672 = vmatprep.subr.mxu0 0.0
        %673 = vmatpush1.msra.mxu0 0.0
        %674 = vmatprep.subr.mxu0 0.0
        %675 = vmatpush1.msra.mxu0 0.0
        %676 = vmatprep.subr.mxu0 0.0
        %677 = vmatpush1.msra.mxu0 0.0
        %678 = vmatprep.subr.mxu0 0.0
        %679 = vmatpush1.msra.mxu0 0.0
        %680 = vmatprep.subr.mxu0 0.0
        %681 = vmatpush1.msra.mxu0 0.0
        %682 = vmatprep.subr.mxu0 0.0
        %683 = vmatpush1.msra.mxu0 0.0
        %684 = vmatprep.subr.mxu0 0.0
        %685 = vmatpush1.msra.mxu0 0.0
        %686 = vmatprep.subr.mxu0 0.0
        %687 = vmatpush1.msra.mxu0 0.0
        %688 = vmatprep.subr.mxu0 0.0
        %689 = vmatpush1.msra.mxu0 0.0
        %690 = vmatprep.subr.mxu0 0.0
        %691 = vmatpush1.msra.mxu0 0.0
        %692 = vmatprep.subr.mxu0 0.0
        %693 = vmatpush1.msra.mxu0 0.0
        %694 = vmatprep.mubr.f32.mxu0 0.0
        %695 = vmatmul.mubr.f32.gmra.mrb[0].mxu0 %v628
        %v696 = vpop.f32.mrb[0].mxu0
        %v697 = vadd.f32 0.0, %v696
        %v698 = vpop.f32.mrb[0].mxu0
        %699 = vdwg.mxu0
        %v700 = vmul.f32 %v543, 0.35355338
        %vm701 = vcmask 64512
        %v703 = vsel %vm701, %v700, 0
        %v706 = vsel %vm701, %v620, 0
        %708 = vmatprep.subr.mxu0 0.0
        %709 = vmatpush1.xpose.msra.mxu0 %v706
        %710 = vmatprep.subr.mxu0 0.0
        %711 = vmatpush1.xpose.msra.mxu0 0.0
        %712 = vmatprep.subr.mxu0 0.0
        %713 = vmatpush1.xpose.msra.mxu0 0.0
        %714 = vmatprep.subr.mxu0 0.0
        %715 = vmatpush1.xpose.msra.mxu0 0.0
        %716 = vmatprep.subr.mxu0 0.0
        %717 = vmatpush1.xpose.msra.mxu0 0.0
        %718 = vmatprep.subr.mxu0 0.0
        %719 = vmatpush1.xpose.msra.mxu0 0.0
        %720 = vmatprep.subr.mxu0 0.0
        %721 = vmatpush1.xpose.msra.mxu0 0.0
        %722 = vmatprep.subr.mxu0 0.0
        %723 = vmatpush1.xpose.msra.mxu0 0.0
        %724 = vmatprep.subr.mxu0 0.0
        %725 = vmatpush1.xpose.msra.mxu0 0.0
        %726 = vmatprep.subr.mxu0 0.0
        %727 = vmatpush1.xpose.msra.mxu0 0.0
        %728 = vmatprep.subr.mxu0 0.0
        %729 = vmatpush1.xpose.msra.mxu0 0.0
        %730 = vmatprep.subr.mxu0 0.0
        %731 = vmatpush1.xpose.msra.mxu0 0.0
        %732 = vmatprep.subr.mxu0 0.0
        %733 = vmatpush1.xpose.msra.mxu0 0.0
        %734 = vmatprep.subr.mxu0 0.0
        %735 = vmatpush1.xpose.msra.mxu0 0.0
        %736 = vmatprep.subr.mxu0 0.0
        %737 = vmatpush1.xpose.msra.mxu0 0.0
        %738 = vmatprep.subr.mxu0 0.0
        %739 = vmatpush1.xpose.msra.mxu0 0.0
        %740 = vmatprep.subr.mxu0 0.0
        %741 = vmatpush1.xpose.msra.mxu0 0.0
        %742 = vmatprep.subr.mxu0 0.0
        %743 = vmatpush1.xpose.msra.mxu0 0.0
        %744 = vmatprep.subr.mxu0 0.0
        %745 = vmatpush1.xpose.msra.mxu0 0.0
        %746 = vmatprep.subr.mxu0 0.0
        %747 = vmatpush1.xpose.msra.mxu0 0.0
        %748 = vmatprep.subr.mxu0 0.0
        %749 = vmatpush1.xpose.msra.mxu0 0.0
        %750 = vmatprep.subr.mxu0 0.0
        %751 = vmatpush1.xpose.msra.mxu0 0.0
        %752 = vmatprep.subr.mxu0 0.0
        %753 = vmatpush1.xpose.msra.mxu0 0.0
        %754 = vmatprep.subr.mxu0 0.0
        %755 = vmatpush1.xpose.msra.mxu0 0.0
        %756 = vmatprep.subr.mxu0 0.0
        %757 = vmatpush1.xpose.msra.mxu0 0.0
        %758 = vmatprep.subr.mxu0 0.0
        %759 = vmatpush1.xpose.msra.mxu0 0.0
        %760 = vmatprep.subr.mxu0 0.0
        %761 = vmatpush1.xpose.msra.mxu0 0.0
        %762 = vmatprep.subr.mxu0 0.0
        %763 = vmatpush1.xpose.msra.mxu0 0.0
        %764 = vmatprep.subr.mxu0 0.0
        %765 = vmatpush1.xpose.msra.mxu0 0.0
        %766 = vmatprep.subr.mxu0 0.0
        %767 = vmatpush1.xpose.msra.mxu0 0.0
        %768 = vmatprep.subr.mxu0 0.0
        %769 = vmatpush1.xpose.msra.mxu0 0.0
        %770 = vmatprep.subr.mxu0 0.0
        %771 = vmatpush1.xpose.msra.mxu0 0.0
        %772 = vmatprep.mubr.f32.mxu0 0.0
        %773 = vmatmul.mubr.f32.gmra.mrb[0].mxu0 %v703
        %v774 = vpop.f32.mrb[0].mxu0
        %v775 = vadd.f32 0.0, %v774
        %v776 = vpop.f32.mrb[0].mxu0
        %777 = vdwg.mxu0
        %v778 = vsel %vm701, %v775, -inf
        %779 = vmax.xlane.f32.xlu0 %v778
        %v780 = vpop.xlane.xlu0 %779
        %v781 = vsub.f32 %v775, %v780
        %v782 = vmul.f32 %v781, 1.442695
        %v783 = vpow.pop %v782
        %v784 = vsel %vm701, %v783, 0.0
        %785 = vadd.xlane.f32.xlu0 %v784
        %v786 = vpop.xlane.xlu0 %785
        %v787 = vrcp.pop %v786
        %v788 = vmul.f32 1.0, %v787
        %v789 = vmul.f32 %v783, %v788
        %790 = vst.msk [vmem:[%s424] sm:$0xff] %vm701, %v789
        %v792 = vsel %vm701, %v789, 0
        %794 = vmatprep.subr.mxu0 0.0
        %795 = vmatpush1.msra.mxu0 %v697
        %796 = vmatprep.subr.mxu0 0.0
        %797 = vmatpush1.msra.mxu0 0.0
        %798 = vmatprep.subr.mxu0 0.0
        %799 = vmatpush1.msra.mxu0 0.0
        %800 = vmatprep.subr.mxu0 0.0
        %801 = vmatpush1.msra.mxu0 0.0
        %802 = vmatprep.subr.mxu0 0.0
        %803 = vmatpush1.msra.mxu0 0.0
        %804 = vmatprep.subr.mxu0 0.0
        %805 = vmatpush1.msra.mxu0 0.0
        %806 = vmatprep.subr.mxu0 0.0
        %807 = vmatpush1.msra.mxu0 0.0
        %808 = vmatprep.subr.mxu0 0.0
        %809 = vmatpush1.msra.mxu0 0.0
        %810 = vmatprep.subr.mxu0 0.0
        %811 = vmatpush1.msra.mxu0 0.0
        %812 = vmatprep.subr.mxu0 0.0
        %813 = vmatpush1.msra.mxu0 0.0
        %814 = vmatprep.subr.mxu0 0.0
        %815 = vmatpush1.msra.mxu0 0.0
        %816 = vmatprep.subr.mxu0 0.0
        %817 = vmatpush1.msra.mxu0 0.0
        %818 = vmatprep.subr.mxu0 0.0
        %819 = vmatpush1.msra.mxu0 0.0
        %820 = vmatprep.subr.mxu0 0.0
        %821 = vmatpush1.msra.mxu0 0.0
        %822 = vmatprep.subr.mxu0 0.0
        %823 = vmatpush1.msra.mxu0 0.0
        %824 = vmatprep.subr.mxu0 0.0
        %825 = vmatpush1.msra.mxu0 0.0
        %826 = vmatprep.subr.mxu0 0.0
        %827 = vmatpush1.msra.mxu0 0.0
        %828 = vmatprep.subr.mxu0 0.0
        %829 = vmatpush1.msra.mxu0 0.0
        %830 = vmatprep.subr.mxu0 0.0
        %831 = vmatpush1.msra.mxu0 0.0
        %832 = vmatprep.subr.mxu0 0.0
        %833 = vmatpush1.msra.mxu0 0.0
        %834 = vmatprep.subr.mxu0 0.0
        %835 = vmatpush1.msra.mxu0 0.0
        %836 = vmatprep.subr.mxu0 0.0
        %837 = vmatpush1.msra.mxu0 0.0
        %838 = vmatprep.subr.mxu0 0.0
        %839 = vmatpush1.msra.mxu0 0.0
        %840 = vmatprep.subr.mxu0 0.0
        %841 = vmatpush1.msra.mxu0 0.0
        %842 = vmatprep.subr.mxu0 0.0
        %843 = vmatpush1.msra.mxu0 0.0
        %844 = vmatprep.subr.mxu0 0.0
        %845 = vmatpush1.msra.mxu0 0.0
        %846 = vmatprep.subr.mxu0 0.0
        %847 = vmatpush1.msra.mxu0 0.0
        %848 = vmatprep.subr.mxu0 0.0
        %849 = vmatpush1.msra.mxu0 0.0
        %850 = vmatprep.subr.mxu0 0.0
        %851 = vmatpush1.msra.mxu0 0.0
        %852 = vmatprep.subr.mxu0 0.0
        %853 = vmatpush1.msra.mxu0 0.0
        %854 = vmatprep.subr.mxu0 0.0
        %855 = vmatpush1.msra.mxu0 0.0
        %856 = vmatprep.subr.mxu0 0.0
        %857 = vmatpush1.msra.mxu0 0.0
        %858 = vmatprep.mubr.f32.mxu0 0.0
        %859 = vmatmul.mubr.f32.gmra.mrb[0].mxu0 %v792
        %v860 = vpop.f32.mrb[0].mxu0
        %v861 = vadd.f32 0.0, %v860
        %v862 = vpop.f32.mrb[0].mxu0
        %863 = vdwg.mxu0
        %v864 = vld [vmem:[#allocation2] sm:$0xff]
        %v865 = vld [vmem:[%s458] sm:$0xff]
        %v867 = vsel %vm701, %v861, 0
        %869 = vmatprep.subr.mxu0 0.0
        %870 = vmatpush1.msra.mxu0 %v865
        %871 = vmatprep.subr.mxu0 0.0
        %872 = vmatpush1.msra.mxu0 0.0
        %873 = vmatprep.subr.mxu0 0.0
        %874 = vmatpush1.msra.mxu0 0.0
        %875 = vmatprep.subr.mxu0 0.0
        %876 = vmatpush1.msra.mxu0 0.0
        %877 = vmatprep.subr.mxu0 0.0
        %878 = vmatpush1.msra.mxu0 0.0
        %879 = vmatprep.subr.mxu0 0.0
        %880 = vmatpush1.msra.mxu0 0.0
        %881 = vmatprep.subr.mxu0 0.0
        %882 = vmatpush1.msra.mxu0 0.0
        %883 = vmatprep.subr.mxu0 0.0
        %884 = vmatpush1.msra.mxu0 0.0
        %885 = vmatprep.subr.mxu0 0.0
        %886 = vmatpush1.msra.mxu0 0.0
        %887 = vmatprep.subr.mxu0 0.0
        %888 = vmatpush1.msra.mxu0 0.0
        %889 = vmatprep.subr.mxu0 0.0
        %890 = vmatpush1.msra.mxu0 0.0
        %891 = vmatprep.subr.mxu0 0.0
        %892 = vmatpush1.msra.mxu0 0.0
        %893 = vmatprep.subr.mxu0 0.0
        %894 = vmatpush1.msra.mxu0 0.0
        %895 = vmatprep.subr.mxu0 0.0
        %896 = vmatpush1.msra.mxu0 0.0
        %897 = vmatprep.subr.mxu0 0.0
        %898 = vmatpush1.msra.mxu0 0.0
        %899 = vmatprep.subr.mxu0 0.0
        %900 = vmatpush1.msra.mxu0 0.0
        %901 = vmatprep.subr.mxu0 0.0
        %902 = vmatpush1.msra.mxu0 0.0
        %903 = vmatprep.subr.mxu0 0.0
        %904 = vmatpush1.msra.mxu0 0.0
        %905 = vmatprep.subr.mxu0 0.0
        %906 = vmatpush1.msra.mxu0 0.0
        %907 = vmatprep.subr.mxu0 0.0
        %908 = vmatpush1.msra.mxu0 0.0
        %909 = vmatprep.subr.mxu0 0.0
        %910 = vmatpush1.msra.mxu0 0.0
        %911 = vmatprep.subr.mxu0 0.0
        %912 = vmatpush1.msra.mxu0 0.0
        %913 = vmatprep.subr.mxu0 0.0
        %914 = vmatpush1.msra.mxu0 0.0
        %915 = vmatprep.subr.mxu0 0.0
        %916 = vmatpush1.msra.mxu0 0.0
        %917 = vmatprep.subr.mxu0 0.0
        %918 = vmatpush1.msra.mxu0 0.0
        %919 = vmatprep.subr.mxu0 0.0
        %920 = vmatpush1.msra.mxu0 0.0
        %921 = vmatprep.subr.mxu0 0.0
        %922 = vmatpush1.msra.mxu0 0.0
        %923 = vmatprep.subr.mxu0 0.0
        %924 = vmatpush1.msra.mxu0 0.0
        %925 = vmatprep.subr.mxu0 0.0
        %926 = vmatpush1.msra.mxu0 0.0
        %927 = vmatprep.subr.mxu0 0.0
        %928 = vmatpush1.msra.mxu0 0.0
        %929 = vmatprep.subr.mxu0 0.0
        %930 = vmatpush1.msra.mxu0 0.0
        %931 = vmatprep.subr.mxu0 0.0
        %932 = vmatpush1.msra.mxu0 0.0
        %933 = vmatprep.mubr.f32.mxu0 0.0
        %934 = vmatmul.mubr.f32.gmra.mrb[0].mxu0 %v867
        %v935 = vpop.f32.mrb[0].mxu0
        %v936 = vadd.f32 0.0, %v935
        %v937 = vpop.f32.mrb[0].mxu0
        %938 = vdwg.mxu0
        %v939 = vadd.f32 %v864, %v936
        %940 = vst.msk [vmem:[#allocation2] sm:$0xff] %vm472, %v939
        %p941 = scmp.eq.s32.totalorder %s33, 3
        // Predicated region
        $region53: #{tpu_custom_call.1} parent=47 // pred_check
          %p942 = pneg %p941
        $region54: #{tpu_custom_call.1} parent=47 // pred_check_branch
          %944 = sbr.rel (%p942) target = $region56
        $region55: #{tpu_custom_call.1} parent=47 // pred_region
          %v945 = vld [vmem:[#allocation2] sm:$0xff]
          %946 = vst.msk [vmem:[%s417] sm:$0xff] %vm472, %v945
        $region56: #{tpu_custom_call.1} parent=47 // pred_fallthru
          _
        %s947 = sand.u32 %s239, 1
        %s948 = scalar_lea.sflag [#allocation4], %s947
        %s949 = sand.u32 %s239, 1
        %s950 = smul.addr %s949, 8
        %s951 = scalar_lea.vmem [#allocation3], %s950
        %s952 = sand.u32 %s269, 1
        %s953 = scalar_lea.sflag [#allocation6], %s952
        %s954 = sand.u32 %s269, 1
        %s955 = smul.addr %s954, 8
        %s956 = scalar_lea.vmem [#allocation5], %s955
        // Predicated region
        $region57: #{tpu_custom_call.1} parent=47 // pred_check
          %p957 = pneg %p249
        $region58: #{tpu_custom_call.1} parent=47 // pred_check_branch
          %959 = sbr.rel (%p957) target = $region60
        $region59: #{tpu_custom_call.1} parent=47 // pred_region
          %s961 = ssub.s32 128, 128
          %962 = vsyncadd %s948, %s961
          %s963 = sadd.s32 %s32, %s31
          %s964 = smul.addr %s963, 128
          %s965 = scalar_lea.hbm %s7, %s964
          %s967 = sshll.u32 %s951, 4
          %s968 = int_to_ptr.vmem [resolvable:$true] %s967
          %970 = dma.vmem_to_hbm [thread:$0]  %s968, 128, %s965, %s948
        $region60: #{tpu_custom_call.1} parent=47 // pred_fallthru
          _
        // Predicated region
        $region61: #{tpu_custom_call.1} parent=47 // pred_check
          %p971 = pneg %p279
        $region62: #{tpu_custom_call.1} parent=47 // pred_check_branch
          %973 = sbr.rel (%p971) target = $region64
        $region63: #{tpu_custom_call.1} parent=47 // pred_region
          %s975 = ssub.s32 128, 128
          %976 = vsyncadd %s953, %s975
          %s977 = sadd.s32 %s32, %s33
          %s978 = smul.addr %s31, 4
          %s979 = sadd.s32 %s977, %s978
          %s980 = smul.addr %s979, 128
          %s981 = scalar_lea.hbm %s8, %s980
          %s983 = sshll.u32 %s956, 4
          %s984 = int_to_ptr.vmem [resolvable:$true] %s983
          %986 = dma.vmem_to_hbm [thread:$0]  %s984, 128, %s981, %s953
        $region64: #{tpu_custom_call.1} parent=47 // pred_fallthru
          _
      $region48: #{tpu_custom_call.1} parent=5 // pred_fallthru
        _
      %p987 = scmp.le.s32.totalorder 2, %s21
      // Predicated region
      $region65: #{tpu_custom_call.1} parent=5 // pred_check
        %p988 = pneg %p987
      $region66: #{tpu_custom_call.1} parent=5 // pred_check_branch
        %990 = sbr.rel (%p988) target = $region68
      $region67: #{tpu_custom_call.1} parent=5 // pred_region
        %s991 = ssub.s32 %s21, 2
        // Predicated region
        $region69: #{tpu_custom_call.1} parent=67 // pred_check
          %p992 = pneg %p255
        $region70: #{tpu_custom_call.1} parent=67 // pred_check_branch
          %994 = sbr.rel (%p992) target = $region72
        $region71: #{tpu_custom_call.1} parent=67 // pred_region
          %s995 = sand.u32 %s240, 1
          %s996 = scalar_lea.sflag [#allocation4], %s995
          %s997 = sand.u32 %s240, 1
          %s998 = smul.addr %s997, 8
          %s999 = scalar_lea.vmem [#allocation3], %s998
          %1000 = dma.done %s996, 128
        $region72: #{tpu_custom_call.1} parent=67 // pred_fallthru
          _
        // Predicated region
        $region73: #{tpu_custom_call.1} parent=67 // pred_check
          %p1001 = pneg %p285
        $region74: #{tpu_custom_call.1} parent=67 // pred_check_branch
          %1003 = sbr.rel (%p1001) target = $region76
        $region75: #{tpu_custom_call.1} parent=67 // pred_region
          %s1004 = sand.u32 %s270, 1
          %s1005 = scalar_lea.sflag [#allocation6], %s1004
          %s1006 = sand.u32 %s270, 1
          %s1007 = smul.addr %s1006, 8
          %s1008 = scalar_lea.vmem [#allocation5], %s1007
          %1009 = dma.done %s1005, 128
        $region76: #{tpu_custom_call.1} parent=67 // pred_fallthru
          _
      $region68: #{tpu_custom_call.1} parent=5 // pred_fallthru
        _
    $region6: #{tpu_custom_call.1} parent=1 // loop_footer
      %s25 = sadd.s32 1, %s21
    $region7: #{tpu_custom_call.1} parent=1 // loop_footer_branch
      %20 = sbr.rel target = $region3
    $region8: #{tpu_custom_call.1} parent=1 // loop_exit
      _
    %1010 = vsyncpa [#allocation4], 1
    %s1011 = scalar_lea.sflag [#allocation4], 1
    %1012 = vsyncpa %s1011, 1
    %1013 = vsyncpa [#allocation6], 1
    %s1014 = scalar_lea.sflag [#allocation6], 1
    %1015 = vsyncpa %s1014, 1

</llo_original>
